<compile_context>
chip_gen: v7x
topology: tpu7x:2x2x1
jax: 0.10.0
libtpu: 0.0.40
codegen_flags: <defaults>
</compile_context>

<pallas_src>
import functools

import jax
import jax.numpy as jnp
from jax.experimental import pallas as pl
from jax.experimental.pallas import tpu as pltpu

MASK_BIAS = -1e10   # value the PyTorch forward adds before the halting softmax;
                    # reused for key-padding masking (see note above)
NEG_INF = -1e30     # used only by the pure-JAX reference


def _global_mha_kernel(x_ref, bias_ref, w_ref, b_ref, out_ref, halt_ref,
                       *, dim, head, bb, seq):
    # per-grid-step shapes:
    #   x_ref    : (1, BB, T, D)        bf16 activations
    #   bias_ref : (1, BB, 2, T)        f32: row 0 = key-padding bias, row 1 = halting bias
    #   w_ref    : (D, 2D + H*D)        bf16 fused [Wq^T*scale | Wk^T | W_vo]
    #   b_ref    : (1, 2D + H*D)        f32 fused bias (q pre-scaled, b_out folded into vo)
    #   out_ref  : (1, BB, T*D)         bf16 lane-dense attention output
    #   halt_ref : (1, 1, BB*T)         f32 lane-dense halting score
    D, H, T = dim, head, seq
    Dh = D // H
    N = 2 * D + H * D

    x2 = x_ref[...].reshape(bb * T, D)                    # (BB*T, D) bf16
    biases = bias_ref[...].reshape(bb, 2, T)              # (BB, 2, T) f32
    kp_bias = biases[:, 0:1, :]                           # (BB, 1, T) key-padding bias
    halt_bias = biases[:, 1, :]                           # (BB, T)    halting bias

    # fused q/k/value-out projection on the MXU, f32 accumulation, single bf16 cast
    qkvo = jnp.dot(x2, w_ref[...], preferred_element_type=jnp.float32) + b_ref[...]
    qkvo = qkvo.astype(jnp.bfloat16).reshape(bb, T, N)    # (BB, T, 2D + H*D) bf16

    halt_acc = jnp.zeros((bb, T), dtype=jnp.float32)      # query-axis sum of probs
    out_acc = jnp.zeros((bb, T, D), dtype=jnp.float32)    # attention/out-proj accumulator

    # static unroll over heads (H is small); W_out is pre-folded into vo_h so
    # each head contributes a single K=T matmul straight into out_acc.
    for h in range(H):
        qh = qkvo[:, :, h * Dh:(h + 1) * Dh]                        # (BB, T, Dh) bf16
        kh = qkvo[:, :, D + h * Dh:D + (h + 1) * Dh]                # (BB, T, Dh) bf16
        voh = qkvo[:, :, 2 * D + h * D:2 * D + (h + 1) * D]         # (BB, T, D)  bf16

        scores = jnp.einsum('bqd,bkd->bqk', qh, kh,
                            preferred_element_type=jnp.float32)     # (BB, T, T) f32
        scores = scores + kp_bias                                   # mask padded keys
        m = jnp.max(scores, axis=-1, keepdims=True)
        e = jnp.exp(scores - m)
        inv = pl.reciprocal(jnp.sum(e, axis=-1, keepdims=True), approx=True)
        probs = e * inv                                             # (BB, T, T) f32

        halt_acc = halt_acc + jnp.sum(probs, axis=1)                # sum over query axis

        out_acc = out_acc + jnp.einsum('bqk,bkd->bqd',
                                       probs.astype(jnp.bfloat16), voh,
                                       preferred_element_type=jnp.float32)

    # lane-dense bf16 store of the attention output (reshaped back in the wrapper)
    out_ref[...] = out_acc.reshape(1, bb, T * D).astype(out_ref.dtype)

    # attn weights averaged over heads, summed over queries, + halting bias, softmax
    halt = halt_acc * (1.0 / H) + halt_bias                         # (BB, T)
    hm = jnp.max(halt, axis=-1, keepdims=True)
    he = jnp.exp(halt - hm)
    hinv = pl.reciprocal(jnp.sum(he, axis=-1, keepdims=True), approx=True)
    halt_ref[...] = (he * hinv).reshape(1, 1, bb * T).astype(halt_ref.dtype)


def _pick_bb(B, T, target_rows=512):
    """Largest divisor of B with BB*T <= ~target_rows, capped at B//2 so the
    parallel grid axis has >= 2 steps (keeps both v7x TensorCores busy).
    target_rows should be swept (256/512/1024); on v5e prefer BB*T a multiple
    of 128."""
    want = max(1, target_rows // max(T, 1))
    if B >= 2:
        want = min(want, max(1, B // 2))
    bb = 1
    for d in range(1, B + 1):
        if B % d == 0 and d <= want:
            bb = d
    return bb


def global_mha_pallas(x_tbc, mask_bt, params, *, dim, head):
    """x_tbc: (T, B, C) like the PyTorch module.  mask_bt: (B, T), nonzero = padded key."""
    w_in, b_in, w_out, b_out = params
    T, B, D = x_tbc.shape
    H = head
    assert D == dim and D % H == 0

    Dh = D // H
    scale = float(Dh) ** -0.5

    BB = _pick_bb(B, T)
    G = B // BB
    # TODO(synk): for very long T a KV-tiled / online-softmax variant is needed
    # on v7x (64 MiB VMEM); at these sizes the full (T, T) probs fit easily.

    # ---- wrapper-side prep (done once, outside the kernel) ----
    w_q, w_k, w_v = w_in[:D], w_in[D:2 * D], w_in[2 * D:]
    b_q, b_k, b_v = b_in[:D], b_in[D:2 * D], b_in[2 * D:]
    w_out_t = w_out.T.astype(jnp.float32)                  # (D, D)
    w_v_t = w_v.T.astype(jnp.float32)                      # (D, D)

    # fold out_proj into the value projection (in f32, then cast once to bf16):
    #   W_vo_h = W_v_h^T @ W_out^T_h ; b_vo_h = b_v_h @ W_out^T_h + b_out / H
    w_vo = jnp.concatenate(
        [w_v_t[:, h * Dh:(h + 1) * Dh] @ w_out_t[h * Dh:(h + 1) * Dh, :]
         for h in range(H)], axis=1)                                      # (D, H*D)
    b_vo = jnp.concatenate(
        [b_v[h * Dh:(h + 1) * Dh] @ w_out_t[h * Dh:(h + 1) * Dh, :] + b_out / H
         for h in range(H)], axis=0)                                      # (H*D,)

    w_fused = jnp.concatenate([w_q.T * scale, w_k.T, w_vo],
                              axis=1).astype(jnp.bfloat16)                # (D, 2D + H*D)
    b_fused = jnp.concatenate([b_q * scale, b_k, b_vo]
                              ).reshape(1, 2 * D + H * D).astype(jnp.float32)

    # batch-major activations grouped by grid step, bf16 for the MXU
    x_g = jnp.transpose(x_tbc, (1, 0, 2)).reshape(G, BB, T, D).astype(jnp.bfloat16)
    # precomputed biases (no compare+select in the kernel):
    #   row 0: key-padding bias (mask.bool() -> -1e10), row 1: halting bias (mask * -1e10)
    kp_bias = jnp.where(mask_bt != 0, MASK_BIAS, 0.0).astype(jnp.float32)
    halt_bias = mask_bt.astype(jnp.float32) * MASK_BIAS
    bias_g = jnp.stack([kp_bias, halt_bias], axis=1).reshape(G, BB, 2, T)

    kernel = functools.partial(_global_mha_kernel, dim=dim, head=head, bb=BB, seq=T)

    out_g, halt_g = pl.pallas_call(
        kernel,
        out_shape=(
            jax.ShapeDtypeStruct((G, BB, T * D), jnp.bfloat16),   # lane-dense attn output
            jax.ShapeDtypeStruct((G, 1, BB * T), jnp.float32),    # lane-dense halting score
        ),
        grid_spec=pltpu.PrefetchScalarGridSpec(
            num_scalar_prefetch=0,
            grid=(G,),
            in_specs=[
                pl.BlockSpec((1, BB, T, D), lambda g: (g, 0, 0, 0)),        # x
                pl.BlockSpec((1, BB, 2, T), lambda g: (g, 0, 0, 0)),        # biases
                pl.BlockSpec((D, 2 * D + H * D), lambda g: (0, 0)),         # fused weight
                pl.BlockSpec((1, 2 * D + H * D), lambda g: (0, 0)),         # fused bias
            ],
            out_specs=[
                pl.BlockSpec((1, BB, T * D), lambda g: (g, 0, 0)),
                pl.BlockSpec((1, 1, BB * T), lambda g: (g, 0, 0)),
            ],
        ),
        compiler_params=pltpu.CompilerParams(
            dimension_semantics=("parallel",)),
    )(x_g, bias_g, w_fused, b_fused)

    attn_output = jnp.transpose(out_g.reshape(B, T, D), (1, 0, 2)).astype(jnp.float32)
    haltingscore = halt_g.reshape(B, T)
    return attn_output, haltingscore


def jax_reference(x_tbc, mask_bt, params, *, dim, head):
    """Pure-JAX (f32) mirror of the PyTorch forward, for verification."""
    w_in, b_in, w_out, b_out = params
    T, B, D = x_tbc.shape
    H = head
    Dh = D // H
    x = jnp.transpose(x_tbc, (1, 0, 2))                        # (B, T, D)
    qkv = x @ w_in.T + b_in                                    # (B, T, 3D)
    q, k, v = jnp.split(qkv, 3, axis=-1)
    q = q * (float(Dh) ** -0.5)
    qh = q.reshape(B, T, H, Dh).transpose(0, 2, 1, 3)
    kh = k.reshape(B, T, H, Dh).transpose(0, 2, 1, 3)
    vh = v.reshape(B, T, H, Dh).transpose(0, 2, 1, 3)
    scores = jnp.einsum('bhtd,bhsd->bhts', qh, kh)
    bias = jnp.where(mask_bt != 0, NEG_INF, 0.0)[:, None, None, :]
    probs = jax.nn.softmax(scores + bias, axis=-1)
    ctx = jnp.einsum('bhts,bhsd->bhtd', probs, vh)
    ctx = ctx.transpose(0, 2, 1, 3).reshape(B, T, D)
    out = ctx @ w_out.T + b_out                                # (B, T, D)
    avg_w = probs.mean(axis=1)                                 # (B, T, T)
    halt = avg_w.sum(axis=1) + mask_bt * (-10000000000.0)
    halt = jax.nn.softmax(halt, axis=-1)
    return jnp.transpose(out, (1, 0, 2)), halt


if __name__ == "__main__":
    DIM = 32     # embed dim
    HEAD = 4     # num heads
    T = 8        # sequence length
    B = 2        # batch

    key = jax.random.PRNGKey(0)
    kx, kwi, kbi, kwo, kbo = jax.random.split(key, 5)

    # deterministic synthetic parameters (shapes match nn.MultiheadAttention)
    w_in = 0.1 * jax.random.normal(kwi, (3 * DIM, DIM), dtype=jnp.float32)
    b_in = 0.05 * jax.random.normal(kbi, (3 * DIM,), dtype=jnp.float32)
    w_out = 0.1 * jax.random.normal(kwo, (DIM, DIM), dtype=jnp.float32)
    b_out = 0.05 * jax.random.normal(kbo, (DIM,), dtype=jnp.float32)
    params = (w_in, b_in, w_out, b_out)

    # inputs: x is (t, batch, c); mask is (batch, t), 1.0 = padded token
    x = jax.random.normal(kx, (T, B, DIM), dtype=jnp.float32)
    mask = jnp.zeros((B, T), dtype=jnp.float32)
    mask = mask.at[1, -2:].set(1.0)   # pad last two tokens of batch element 1

    attn_out, halting = global_mha_pallas(x, mask, params, dim=DIM, head=HEAD)
    attn_out = jax.block_until_ready(attn_out)
    halting = jax.block_until_ready(halting)

    ref_out, ref_halt = jax_reference(x, mask, params, dim=DIM, head=HEAD)

    assert attn_out.shape == (T, B, DIM)
    assert halting.shape == (B, T)
    assert jnp.allclose(attn_out, ref_out, atol=2e-2, rtol=2e-2)
    assert jnp.allclose(halting, ref_halt, atol=2e-2, rtol=2e-2)

    print("KERNEL_OK")
</pallas_src>

<mosaic_0001>
module attributes {stable_mosaic.version = 11 : i64} {
  func.func @_global_mha_kernel(%arg0: i32, %arg1: memref<1x1x8x32xbf16, #tpu.memory_space<vmem>>, %arg2: memref<1x1x2x8xf32, #tpu.memory_space<vmem>>, %arg3: memref<32x192xbf16, #tpu.memory_space<vmem>>, %arg4: memref<1x192xf32, #tpu.memory_space<vmem>>, %arg5: memref<1x1x256xbf16, #tpu.memory_space<vmem>>, %arg6: memref<1x1x8xf32, #tpu.memory_space<vmem>>) attributes {dimension_semantics = [#tpu.dimension_semantics<parallel>], iteration_bounds = array<i64: 2>, scalar_prefetch = 0 : i64, scratch_operands = 0 : i64, tpu.core_type = #tpu.core_type<tc>, window_params = [{transform_indices = @transform_0, window_bounds = array<i64: 1, 1, 8, 32>}, {transform_indices = @transform_1, window_bounds = array<i64: 1, 1, 2, 8>}, {pipeline_mode = #tpu.pipeline_mode<synchronous>, transform_indices = @transform_2, window_bounds = array<i64: 32, 192>}, {pipeline_mode = #tpu.pipeline_mode<synchronous>, transform_indices = @transform_3, window_bounds = array<i64: 1, 192>}, {transform_indices = @transform_4, window_bounds = array<i64: 1, 1, 256>}, {transform_indices = @transform_5, window_bounds = array<i64: 1, 1, 8>}]} {
    %c0 = arith.constant 0 : index
    %c0_0 = arith.constant 0 : index
    %c0_1 = arith.constant 0 : index
    %c0_2 = arith.constant 0 : index
    %0 = vector.load %arg1[%c0, %c0_0, %c0_1, %c0_2] : memref<1x1x8x32xbf16, #tpu.memory_space<vmem>>, vector<1x1x8x32xbf16>
    %1 = vector.shape_cast %0 : vector<1x1x8x32xbf16> to vector<8x32xbf16>
    %c0_3 = arith.constant 0 : index
    %c0_4 = arith.constant 0 : index
    %c0_5 = arith.constant 0 : index
    %c0_6 = arith.constant 0 : index
    %2 = vector.load %arg2[%c0_3, %c0_4, %c0_5, %c0_6] : memref<1x1x2x8xf32, #tpu.memory_space<vmem>>, vector<1x1x2x8xf32>
    %3 = vector.shape_cast %2 : vector<1x1x2x8xf32> to vector<1x2x8xf32>
    %4 = vector.extract_strided_slice %3 {offsets = [0, 0, 0], sizes = [1, 1, 8], strides = [1, 1, 1]} : vector<1x2x8xf32> to vector<1x1x8xf32>
    %5 = vector.extract_strided_slice %3 {offsets = [0, 1, 0], sizes = [1, 1, 8], strides = [1, 1, 1]} : vector<1x2x8xf32> to vector<1x1x8xf32>
    %6 = vector.shape_cast %5 : vector<1x1x8xf32> to vector<1x8xf32>
    %c0_7 = arith.constant 0 : index
    %c0_8 = arith.constant 0 : index
    %7 = vector.load %arg3[%c0_7, %c0_8] : memref<32x192xbf16, #tpu.memory_space<vmem>>, vector<32x192xbf16>
    %cst = arith.constant dense<0.000000e+00> : vector<8x192xf32>
    %8 = tpu.matmul %1, %7, %cst {dimension_numbers = #tpu.dot_dimension_numbers<[1], [0], [0], [1], [0, 0, 1, 1], [], []>} : vector<8x32xbf16>, vector<32x192xbf16>, vector<8x192xf32> -> vector<8x192xf32>
    %c0_9 = arith.constant 0 : index
    %c0_10 = arith.constant 0 : index
    %9 = vector.load %arg4[%c0_9, %c0_10] : memref<1x192xf32, #tpu.memory_space<vmem>>, vector<1x192xf32>
    %10 = vector.broadcast %9 : vector<1x192xf32> to vector<8x192xf32>
    %11 = arith.addf %8, %10 : vector<8x192xf32>
    %12 = arith.truncf %11 : vector<8x192xf32> to vector<8x192xbf16>
    %13 = vector.shape_cast %12 : vector<8x192xbf16> to vector<1x8x192xbf16>
    %cst_11 = arith.constant 0.000000e+00 : f32
    %14 = vector.broadcast %cst_11 : f32 to vector<1x8xf32>
    %cst_12 = arith.constant 0.000000e+00 : f32
    %15 = vector.broadcast %cst_12 : f32 to vector<1x8x32xf32>
    %16 = vector.extract_strided_slice %13 {offsets = [0, 0, 0], sizes = [1, 8, 8], strides = [1, 1, 1]} : vector<1x8x192xbf16> to vector<1x8x8xbf16>
    %17 = vector.extract_strided_slice %13 {offsets = [0, 0, 32], sizes = [1, 8, 8], strides = [1, 1, 1]} : vector<1x8x192xbf16> to vector<1x8x8xbf16>
    %18 = vector.extract_strided_slice %13 {offsets = [0, 0, 64], sizes = [1, 8, 32], strides = [1, 1, 1]} : vector<1x8x192xbf16> to vector<1x8x32xbf16>
    "tpu.trace_start"() <{level = 10 : i32, message = "bqd,bkd->bqk"}> : () -> ()
    %cst_13 = arith.constant dense<0.000000e+00> : vector<1x8x8xf32>
    %19 = tpu.matmul %16, %17, %cst_13 {dimension_numbers = #tpu.dot_dimension_numbers<[2], [2], [1], [1], [0, 0, 0, 1, 1, 1], [0], [0]>} : vector<1x8x8xbf16>, vector<1x8x8xbf16>, vector<1x8x8xf32> -> vector<1x8x8xf32>
    "tpu.trace_stop"() : () -> ()
    %20 = vector.broadcast %4 : vector<1x1x8xf32> to vector<1x8x8xf32>
    %21 = arith.addf %19, %20 : vector<1x8x8xf32>
    %cst_14 = arith.constant dense<0xFF800000> : vector<1x8xf32>
    %22 = vector.multi_reduction <maximumf>, %21, %cst_14 [2] : vector<1x8x8xf32> to vector<1x8xf32>
    %23 = vector.shape_cast %22 : vector<1x8xf32> to vector<1x8x1xf32>
    %24 = vector.broadcast %23 : vector<1x8x1xf32> to vector<1x8x8xf32>
    %25 = arith.subf %21, %24 : vector<1x8x8xf32>
    %26 = math.exp %25 : vector<1x8x8xf32>
    %cst_15 = arith.constant dense<0.000000e+00> : vector<1x8xf32>
    %27 = vector.multi_reduction <add>, %26, %cst_15 [2] : vector<1x8x8xf32> to vector<1x8xf32>
    %28 = vector.shape_cast %27 : vector<1x8xf32> to vector<1x8x1xf32>
    %29 = tpu.reciprocal %28 {approx = true} : vector<1x8x1xf32> -> vector<1x8x1xf32>
    %30 = vector.broadcast %29 : vector<1x8x1xf32> to vector<1x8x8xf32>
    %31 = arith.mulf %26, %30 : vector<1x8x8xf32>
    %cst_16 = arith.constant dense<0.000000e+00> : vector<1x8xf32>
    %32 = vector.multi_reduction <add>, %31, %cst_16 [1] : vector<1x8x8xf32> to vector<1x8xf32>
    %33 = arith.addf %14, %32 : vector<1x8xf32>
    %34 = arith.truncf %31 : vector<1x8x8xf32> to vector<1x8x8xbf16>
    "tpu.trace_start"() <{level = 10 : i32, message = "bqk,bkd->bqd"}> : () -> ()
    %cst_17 = arith.constant dense<0.000000e+00> : vector<1x8x32xf32>
    %35 = tpu.matmul %34, %18, %cst_17 {dimension_numbers = #tpu.dot_dimension_numbers<[2], [1], [1], [2], [0, 0, 0, 1, 1, 2], [0], [0]>} : vector<1x8x8xbf16>, vector<1x8x32xbf16>, vector<1x8x32xf32> -> vector<1x8x32xf32>
    "tpu.trace_stop"() : () -> ()
    %36 = arith.addf %15, %35 : vector<1x8x32xf32>
    %37 = vector.extract_strided_slice %13 {offsets = [0, 0, 8], sizes = [1, 8, 8], strides = [1, 1, 1]} : vector<1x8x192xbf16> to vector<1x8x8xbf16>
    %38 = vector.extract_strided_slice %13 {offsets = [0, 0, 40], sizes = [1, 8, 8], strides = [1, 1, 1]} : vector<1x8x192xbf16> to vector<1x8x8xbf16>
    %39 = vector.extract_strided_slice %13 {offsets = [0, 0, 96], sizes = [1, 8, 32], strides = [1, 1, 1]} : vector<1x8x192xbf16> to vector<1x8x32xbf16>
    "tpu.trace_start"() <{level = 10 : i32, message = "bqd,bkd->bqk"}> : () -> ()
    %cst_18 = arith.constant dense<0.000000e+00> : vector<1x8x8xf32>
    %40 = tpu.matmul %37, %38, %cst_18 {dimension_numbers = #tpu.dot_dimension_numbers<[2], [2], [1], [1], [0, 0, 0, 1, 1, 1], [0], [0]>} : vector<1x8x8xbf16>, vector<1x8x8xbf16>, vector<1x8x8xf32> -> vector<1x8x8xf32>
    "tpu.trace_stop"() : () -> ()
    %41 = vector.broadcast %4 : vector<1x1x8xf32> to vector<1x8x8xf32>
    %42 = arith.addf %40, %41 : vector<1x8x8xf32>
    %cst_19 = arith.constant dense<0xFF800000> : vector<1x8xf32>
    %43 = vector.multi_reduction <maximumf>, %42, %cst_19 [2] : vector<1x8x8xf32> to vector<1x8xf32>
    %44 = vector.shape_cast %43 : vector<1x8xf32> to vector<1x8x1xf32>
    %45 = vector.broadcast %44 : vector<1x8x1xf32> to vector<1x8x8xf32>
    %46 = arith.subf %42, %45 : vector<1x8x8xf32>
    %47 = math.exp %46 : vector<1x8x8xf32>
    %cst_20 = arith.constant dense<0.000000e+00> : vector<1x8xf32>
    %48 = vector.multi_reduction <add>, %47, %cst_20 [2] : vector<1x8x8xf32> to vector<1x8xf32>
    %49 = vector.shape_cast %48 : vector<1x8xf32> to vector<1x8x1xf32>
    %50 = tpu.reciprocal %49 {approx = true} : vector<1x8x1xf32> -> vector<1x8x1xf32>
    %51 = vector.broadcast %50 : vector<1x8x1xf32> to vector<1x8x8xf32>
    %52 = arith.mulf %47, %51 : vector<1x8x8xf32>
    %cst_21 = arith.constant dense<0.000000e+00> : vector<1x8xf32>
    %53 = vector.multi_reduction <add>, %52, %cst_21 [1] : vector<1x8x8xf32> to vector<1x8xf32>
    %54 = arith.addf %33, %53 : vector<1x8xf32>
    %55 = arith.truncf %52 : vector<1x8x8xf32> to vector<1x8x8xbf16>
    "tpu.trace_start"() <{level = 10 : i32, message = "bqk,bkd->bqd"}> : () -> ()
    %cst_22 = arith.constant dense<0.000000e+00> : vector<1x8x32xf32>
    %56 = tpu.matmul %55, %39, %cst_22 {dimension_numbers = #tpu.dot_dimension_numbers<[2], [1], [1], [2], [0, 0, 0, 1, 1, 2], [0], [0]>} : vector<1x8x8xbf16>, vector<1x8x32xbf16>, vector<1x8x32xf32> -> vector<1x8x32xf32>
    "tpu.trace_stop"() : () -> ()
    %57 = arith.addf %36, %56 : vector<1x8x32xf32>
    %58 = vector.extract_strided_slice %13 {offsets = [0, 0, 16], sizes = [1, 8, 8], strides = [1, 1, 1]} : vector<1x8x192xbf16> to vector<1x8x8xbf16>
    %59 = vector.extract_strided_slice %13 {offsets = [0, 0, 48], sizes = [1, 8, 8], strides = [1, 1, 1]} : vector<1x8x192xbf16> to vector<1x8x8xbf16>
    %60 = vector.extract_strided_slice %13 {offsets = [0, 0, 128], sizes = [1, 8, 32], strides = [1, 1, 1]} : vector<1x8x192xbf16> to vector<1x8x32xbf16>
    "tpu.trace_start"() <{level = 10 : i32, message = "bqd,bkd->bqk"}> : () -> ()
    %cst_23 = arith.constant dense<0.000000e+00> : vector<1x8x8xf32>
    %61 = tpu.matmul %58, %59, %cst_23 {dimension_numbers = #tpu.dot_dimension_numbers<[2], [2], [1], [1], [0, 0, 0, 1, 1, 1], [0], [0]>} : vector<1x8x8xbf16>, vector<1x8x8xbf16>, vector<1x8x8xf32> -> vector<1x8x8xf32>
    "tpu.trace_stop"() : () -> ()
    %62 = vector.broadcast %4 : vector<1x1x8xf32> to vector<1x8x8xf32>
    %63 = arith.addf %61, %62 : vector<1x8x8xf32>
    %cst_24 = arith.constant dense<0xFF800000> : vector<1x8xf32>
    %64 = vector.multi_reduction <maximumf>, %63, %cst_24 [2] : vector<1x8x8xf32> to vector<1x8xf32>
    %65 = vector.shape_cast %64 : vector<1x8xf32> to vector<1x8x1xf32>
    %66 = vector.broadcast %65 : vector<1x8x1xf32> to vector<1x8x8xf32>
    %67 = arith.subf %63, %66 : vector<1x8x8xf32>
    %68 = math.exp %67 : vector<1x8x8xf32>
    %cst_25 = arith.constant dense<0.000000e+00> : vector<1x8xf32>
    %69 = vector.multi_reduction <add>, %68, %cst_25 [2] : vector<1x8x8xf32> to vector<1x8xf32>
    %70 = vector.shape_cast %69 : vector<1x8xf32> to vector<1x8x1xf32>
    %71 = tpu.reciprocal %70 {approx = true} : vector<1x8x1xf32> -> vector<1x8x1xf32>
    %72 = vector.broadcast %71 : vector<1x8x1xf32> to vector<1x8x8xf32>
    %73 = arith.mulf %68, %72 : vector<1x8x8xf32>
    %cst_26 = arith.constant dense<0.000000e+00> : vector<1x8xf32>
    %74 = vector.multi_reduction <add>, %73, %cst_26 [1] : vector<1x8x8xf32> to vector<1x8xf32>
    %75 = arith.addf %54, %74 : vector<1x8xf32>
    %76 = arith.truncf %73 : vector<1x8x8xf32> to vector<1x8x8xbf16>
    "tpu.trace_start"() <{level = 10 : i32, message = "bqk,bkd->bqd"}> : () -> ()
    %cst_27 = arith.constant dense<0.000000e+00> : vector<1x8x32xf32>
    %77 = tpu.matmul %76, %60, %cst_27 {dimension_numbers = #tpu.dot_dimension_numbers<[2], [1], [1], [2], [0, 0, 0, 1, 1, 2], [0], [0]>} : vector<1x8x8xbf16>, vector<1x8x32xbf16>, vector<1x8x32xf32> -> vector<1x8x32xf32>
    "tpu.trace_stop"() : () -> ()
    %78 = arith.addf %57, %77 : vector<1x8x32xf32>
    %79 = vector.extract_strided_slice %13 {offsets = [0, 0, 24], sizes = [1, 8, 8], strides = [1, 1, 1]} : vector<1x8x192xbf16> to vector<1x8x8xbf16>
    %80 = vector.extract_strided_slice %13 {offsets = [0, 0, 56], sizes = [1, 8, 8], strides = [1, 1, 1]} : vector<1x8x192xbf16> to vector<1x8x8xbf16>
    %81 = vector.extract_strided_slice %13 {offsets = [0, 0, 160], sizes = [1, 8, 32], strides = [1, 1, 1]} : vector<1x8x192xbf16> to vector<1x8x32xbf16>
    "tpu.trace_start"() <{level = 10 : i32, message = "bqd,bkd->bqk"}> : () -> ()
    %cst_28 = arith.constant dense<0.000000e+00> : vector<1x8x8xf32>
    %82 = tpu.matmul %79, %80, %cst_28 {dimension_numbers = #tpu.dot_dimension_numbers<[2], [2], [1], [1], [0, 0, 0, 1, 1, 1], [0], [0]>} : vector<1x8x8xbf16>, vector<1x8x8xbf16>, vector<1x8x8xf32> -> vector<1x8x8xf32>
    "tpu.trace_stop"() : () -> ()
    %83 = vector.broadcast %4 : vector<1x1x8xf32> to vector<1x8x8xf32>
    %84 = arith.addf %82, %83 : vector<1x8x8xf32>
    %cst_29 = arith.constant dense<0xFF800000> : vector<1x8xf32>
    %85 = vector.multi_reduction <maximumf>, %84, %cst_29 [2] : vector<1x8x8xf32> to vector<1x8xf32>
    %86 = vector.shape_cast %85 : vector<1x8xf32> to vector<1x8x1xf32>
    %87 = vector.broadcast %86 : vector<1x8x1xf32> to vector<1x8x8xf32>
    %88 = arith.subf %84, %87 : vector<1x8x8xf32>
    %89 = math.exp %88 : vector<1x8x8xf32>
    %cst_30 = arith.constant dense<0.000000e+00> : vector<1x8xf32>
    %90 = vector.multi_reduction <add>, %89, %cst_30 [2] : vector<1x8x8xf32> to vector<1x8xf32>
    %91 = vector.shape_cast %90 : vector<1x8xf32> to vector<1x8x1xf32>
    %92 = tpu.reciprocal %91 {approx = true} : vector<1x8x1xf32> -> vector<1x8x1xf32>
    %93 = vector.broadcast %92 : vector<1x8x1xf32> to vector<1x8x8xf32>
    %94 = arith.mulf %89, %93 : vector<1x8x8xf32>
    %cst_31 = arith.constant dense<0.000000e+00> : vector<1x8xf32>
    %95 = vector.multi_reduction <add>, %94, %cst_31 [1] : vector<1x8x8xf32> to vector<1x8xf32>
    %96 = arith.addf %75, %95 : vector<1x8xf32>
    %97 = arith.truncf %94 : vector<1x8x8xf32> to vector<1x8x8xbf16>
    "tpu.trace_start"() <{level = 10 : i32, message = "bqk,bkd->bqd"}> : () -> ()
    %cst_32 = arith.constant dense<0.000000e+00> : vector<1x8x32xf32>
    %98 = tpu.matmul %97, %81, %cst_32 {dimension_numbers = #tpu.dot_dimension_numbers<[2], [1], [1], [2], [0, 0, 0, 1, 1, 2], [0], [0]>} : vector<1x8x8xbf16>, vector<1x8x32xbf16>, vector<1x8x32xf32> -> vector<1x8x32xf32>
    "tpu.trace_stop"() : () -> ()
    %99 = arith.addf %78, %98 : vector<1x8x32xf32>
    %100 = vector.shape_cast %99 : vector<1x8x32xf32> to vector<1x1x256xf32>
    %101 = arith.truncf %100 : vector<1x1x256xf32> to vector<1x1x256xbf16>
    %c0_33 = arith.constant 0 : index
    %c0_34 = arith.constant 0 : index
    %c0_35 = arith.constant 0 : index
    %102 = vector.load %arg5[%c0_33, %c0_34, %c0_35] : memref<1x1x256xbf16, #tpu.memory_space<vmem>>, vector<1x1x256xbf16>
    tpu.vector_store %arg5[%c0_33, %c0_34, %c0_35], %101 {strides = array<i32>} : memref<1x1x256xbf16, #tpu.memory_space<vmem>>, vector<1x1x256xbf16>,
    %cst_36 = arith.constant 2.500000e-01 : f32
    %103 = vector.broadcast %cst_36 : f32 to vector<1x8xf32>
    %104 = arith.mulf %96, %103 : vector<1x8xf32>
    %105 = arith.addf %104, %6 : vector<1x8xf32>
    %cst_37 = arith.constant dense<0xFF800000> : vector<1xf32>
    %106 = vector.multi_reduction <maximumf>, %105, %cst_37 [1] : vector<1x8xf32> to vector<1xf32>
    %107 = vector.shape_cast %106 : vector<1xf32> to vector<1x1xf32>
    %108 = vector.broadcast %107 : vector<1x1xf32> to vector<1x8xf32>
    %109 = arith.subf %105, %108 : vector<1x8xf32>
    %110 = math.exp %109 : vector<1x8xf32>
    %cst_38 = arith.constant dense<0.000000e+00> : vector<1xf32>
    %111 = vector.multi_reduction <add>, %110, %cst_38 [1] : vector<1x8xf32> to vector<1xf32>
    %112 = vector.shape_cast %111 : vector<1xf32> to vector<1x1xf32>
    %113 = tpu.reciprocal %112 {approx = true} : vector<1x1xf32> -> vector<1x1xf32>
    %114 = vector.broadcast %113 : vector<1x1xf32> to vector<1x8xf32>
    %115 = arith.mulf %110, %114 : vector<1x8xf32>
    %116 = vector.shape_cast %115 : vector<1x8xf32> to vector<1x1x8xf32>
    %c0_39 = arith.constant 0 : index
    %c0_40 = arith.constant 0 : index
    %c0_41 = arith.constant 0 : index
    %117 = vector.load %arg6[%c0_39, %c0_40, %c0_41] : memref<1x1x8xf32, #tpu.memory_space<vmem>>, vector<1x1x8xf32>
    tpu.vector_store %arg6[%c0_39, %c0_40, %c0_41], %116 {strides = array<i32>} : memref<1x1x8xf32, #tpu.memory_space<vmem>>, vector<1x1x8xf32>,
    return
  }
  func.func @transform_0(%arg0: i32) -> (i32, i32, i32, i32) {
    %c0_i32 = arith.constant 0 : i32
    %c0_i32_0 = arith.constant 0 : i32
    %c0_i32_1 = arith.constant 0 : i32
    %c0_i32_2 = arith.constant 0 : i32
    return %arg0, %c0_i32, %c0_i32_0, %c0_i32_1 : i32, i32, i32, i32
  }
  func.func @transform_1(%arg0: i32) -> (i32, i32, i32, i32) {
    %c0_i32 = arith.constant 0 : i32
    %c0_i32_0 = arith.constant 0 : i32
    %c0_i32_1 = arith.constant 0 : i32
    %c0_i32_2 = arith.constant 0 : i32
    return %arg0, %c0_i32, %c0_i32_0, %c0_i32_1 : i32, i32, i32, i32
  }
  func.func @transform_2(%arg0: i32) -> (i32, i32) {
    %c0_i32 = arith.constant 0 : i32
    %c0_i32_0 = arith.constant 0 : i32
    %c0_i32_1 = arith.constant 0 : i32
    return %c0_i32, %c0_i32_0 : i32, i32
  }
  func.func @transform_3(%arg0: i32) -> (i32, i32) {
    %c0_i32 = arith.constant 0 : i32
    %c0_i32_0 = arith.constant 0 : i32
    %c0_i32_1 = arith.constant 0 : i32
    return %c0_i32, %c0_i32_0 : i32, i32
  }
  func.func @transform_4(%arg0: i32) -> (i32, i32, i32) {
    %c0_i32 = arith.constant 0 : i32
    %c0_i32_0 = arith.constant 0 : i32
    %c0_i32_1 = arith.constant 0 : i32
    return %arg0, %c0_i32, %c0_i32_0 : i32, i32, i32
  }
  func.func @transform_5(%arg0: i32) -> (i32, i32, i32) {
    %c0_i32 = arith.constant 0 : i32
    %c0_i32_0 = arith.constant 0 : i32
    %c0_i32_1 = arith.constant 0 : i32
    return %arg0, %c0_i32, %c0_i32_0 : i32, i32, i32
  }
}

</mosaic_0001>

<llo_original>
// kernel: tpu_custom_call.1
$region0: #{tpu_custom_call.1}
  #allocation0 [shape = 'u32[]', space=smem, size = 0x4, offset = 0x4, fixed_abs, tag = 'smem constant byte address 0x4 - core index']
  #allocation1 [shape = 'u32[144,128]{1,0:T(1,128)}', space=vmem, size = 0x12000, scoped, tag = 'internal scratch']
  %s0 = inlined_call_operand.hbm [shape: bf16[2,1,8,32], index: 0, kind: input, shape index: {}]
  %s1 = inlined_call_operand.hbm [shape: f32[2,1,2,8], index: 1, kind: input, shape index: {}]
  %s2 = inlined_call_operand.hbm [shape: bf16[32,192], index: 2, kind: input, shape index: {}]
  %s3 = inlined_call_operand.vmem [shape: f32[1,192], index: 3, kind: input, shape index: {}]
  %s4 = inlined_call_operand.vmem [shape: bf16[2,1,256], index: 4, kind: output, shape index: {0}]
  %s5 = inlined_call_operand.hbm [shape: f32[2,1,8], index: 5, kind: output, shape index: {1}]
  %6 = xla_tuple %s4, %s5
  %s7 = sld [smem:[#allocation0]]
  $region69: #{tpu_custom_call.1} parent=0
    _
  %s9 = ssub.s32 1, %s7
  %s10 = scalar_select 0, %s9, %s7
  $region1: #{tpu_custom_call.1} parent=0
    #allocation2 [shape = 'u8[4096]{0}', space=vmem, size = 0x1000, scoped, tag = 'input window, operand 0']
    #allocation3 [shape = 's32[2]{0}', space=sflag, size = 0x8, scoped, tag = 'scoped memory for tpu_custom_call.1']
    #allocation4 [shape = 's32[2]{0}', space=sflag, size = 0x8, scoped, tag = 'scoped memory for tpu_custom_call.1']
    #allocation5 [shape = 'u8[2048]{0}', space=vmem, size = 0x800, scoped, tag = 'input window, operand 1']
    #allocation6 [shape = 's32[2]{0}', space=sflag, size = 0x8, scoped, tag = 'scoped memory for tpu_custom_call.1']
    #allocation7 [shape = 'u8[16384]{0}', space=vmem, size = 0x4000, scoped, tag = 'input window, operand 2, single buffered']
    #allocation8 [shape = 'u8[1024]{0}', space=vmem, size = 0x400, scoped, tag = 'output window, operand 1']
    %11 = vsyncpa [#allocation3], 0
    %s12 = scalar_lea.sflag [#allocation3], 1
    %13 = vsyncpa %s12, 0
    %14 = vsyncpa [#allocation6], 0
    %s15 = scalar_lea.sflag [#allocation6], 1
    %16 = vsyncpa %s15, 0
    %17 = vsyncpa [#allocation4], 0
    %s18 = scalar_lea.sflag [#allocation4], 1
    %19 = vsyncpa %s18, 0
    loop: start=0, step=1, limit=4
    $region2: #{tpu_custom_call.1} parent=1 // loop_pre_header
      _
    $region3: #{tpu_custom_call.1} parent=1 // loop_header
      %s21 = sphi 0, %s25
      %p22 = scmp.ge.s32.totalorder %s21, 4
      %s31 = sphi 0, %s33
      %s34 = sphi 0, %s31
      %s35 = sphi 0, %s34
      %s51 = sphi 0, %s35
      %s57 = sphi 0, %s59
      %s60 = sphi 0, %s57
      %s61 = sphi 0, %s60
      %s77 = sphi 0, %s61
      %s81 = sphi 0, %s81
      %s83 = sphi 0, %s81
      %s84 = sphi 0, %s83
      %s98 = sphi 0, %s84
      %s102 = sphi 0, %s102
      %s104 = sphi 0, %s102
      %s105 = sphi 0, %s104
      %s119 = sphi 0, %s105
      %s125 = sphi 0, %s127
      %s128 = sphi 0, %s125
      %s129 = sphi 0, %s128
      %s145 = sphi 0, %s129
      %s151 = sphi 0, %s153
      %s154 = sphi 0, %s151
      %s155 = sphi 0, %s154
      %s171 = sphi 0, %s155
    $region4: #{tpu_custom_call.1} parent=1 // loop_header_branch
      %24 = sbr.rel (%p22) target = $region8
    $region5: #{tpu_custom_call.1} parent=1 // loop_body
      %s26 = ssub.s32 %s21, 1
      %s27 = ssub.s32 %s21, 2
      %s28 = sadd.s32 %s21, 1
      %s29 = ssub.s32 %s21, %s28
      %p30 = scmp.eq.s32.totalorder %s29, 0
      %s32 = sadd.s32 %s31, 1
      %s33 = scalar_select %p30, %s31, %s32
      %p36 = pneg %p30
      %p37 = scmp.eq.s32.totalorder %s21, 1
      %p38 = por %p36, %p37
      %p39 = scmp.ne.s32.totalorder %s31, %s34
      %p40 = scmp.eq.s32.totalorder %s21, 0
      %p41 = por %p39, %p40
      %p42 = scmp.ne.s32.totalorder %s31, %s34
      %p43 = scmp.eq.s32.totalorder %s26, 1
      %p44 = por %p42, %p43
      %p45 = scmp.ne.s32.totalorder %s34, %s35
      %p46 = scmp.eq.s32.totalorder %s26, 0
      %p47 = por %p45, %p46
      %p48 = scmp.ne.s32.totalorder %s34, %s35
      %p49 = scmp.eq.s32.totalorder %s27, 1
      %p50 = por %p48, %p49
      %p52 = scmp.ne.s32.totalorder %s35, %s51
      %p53 = scmp.eq.s32.totalorder %s27, 0
      %p54 = por %p52, %p53
      %s55 = ssub.s32 %s21, %s28
      %p56 = scmp.eq.s32.totalorder %s55, 0
      %s58 = sadd.s32 %s57, 1
      %s59 = scalar_select %p56, %s57, %s58
      %p62 = pneg %p56
      %p63 = scmp.eq.s32.totalorder %s21, 1
      %p64 = por %p62, %p63
      %p65 = scmp.ne.s32.totalorder %s57, %s60
      %p66 = scmp.eq.s32.totalorder %s21, 0
      %p67 = por %p65, %p66
      %p68 = scmp.ne.s32.totalorder %s57, %s60
      %p69 = scmp.eq.s32.totalorder %s26, 1
      %p70 = por %p68, %p69
      %p71 = scmp.ne.s32.totalorder %s60, %s61
      %p72 = scmp.eq.s32.totalorder %s26, 0
      %p73 = por %p71, %p72
      %p74 = scmp.ne.s32.totalorder %s60, %s61
      %p75 = scmp.eq.s32.totalorder %s27, 1
      %p76 = por %p74, %p75
      %p78 = scmp.ne.s32.totalorder %s61, %s77
      %p79 = scmp.eq.s32.totalorder %s27, 0
      %p80 = por %p78, %p79
      %s82 = sadd.s32 %s81, 1
      %p85 = scmp.eq.s32.totalorder %s21, 1
      %p86 = scmp.ne.s32.totalorder %s81, %s83
      %p87 = scmp.eq.s32.totalorder %s21, 0
      %p88 = por %p86, %p87
      %p89 = scmp.ne.s32.totalorder %s81, %s83
      %p90 = scmp.eq.s32.totalorder %s26, 1
      %p91 = por %p89, %p90
      %p92 = scmp.ne.s32.totalorder %s83, %s84
      %p93 = scmp.eq.s32.totalorder %s26, 0
      %p94 = por %p92, %p93
      %p95 = scmp.ne.s32.totalorder %s83, %s84
      %p96 = scmp.eq.s32.totalorder %s27, 1
      %p97 = por %p95, %p96
      %p99 = scmp.ne.s32.totalorder %s84, %s98
      %p100 = scmp.eq.s32.totalorder %s27, 0
      %p101 = por %p99, %p100
      %s103 = sadd.s32 %s102, 1
      %p106 = scmp.eq.s32.totalorder %s21, 1
      %p107 = scmp.ne.s32.totalorder %s102, %s104
      %p108 = scmp.eq.s32.totalorder %s21, 0
      %p109 = por %p107, %p108
      %p110 = scmp.ne.s32.totalorder %s102, %s104
      %p111 = scmp.eq.s32.totalorder %s26, 1
      %p112 = por %p110, %p111
      %p113 = scmp.ne.s32.totalorder %s104, %s105
      %p114 = scmp.eq.s32.totalorder %s26, 0
      %p115 = por %p113, %p114
      %p116 = scmp.ne.s32.totalorder %s104, %s105
      %p117 = scmp.eq.s32.totalorder %s27, 1
      %p118 = por %p116, %p117
      %p120 = scmp.ne.s32.totalorder %s105, %s119
      %p121 = scmp.eq.s32.totalorder %s27, 0
      %p122 = por %p120, %p121
      %s123 = ssub.s32 %s21, %s28
      %p124 = scmp.eq.s32.totalorder %s123, 0
      %s126 = sadd.s32 %s125, 1
      %s127 = scalar_select %p124, %s125, %s126
      %p130 = pneg %p124
      %p131 = scmp.eq.s32.totalorder %s21, 1
      %p132 = por %p130, %p131
      %p133 = scmp.ne.s32.totalorder %s125, %s128
      %p134 = scmp.eq.s32.totalorder %s21, 0
      %p135 = por %p133, %p134
      %p136 = scmp.ne.s32.totalorder %s125, %s128
      %p137 = scmp.eq.s32.totalorder %s26, 1
      %p138 = por %p136, %p137
      %p139 = scmp.ne.s32.totalorder %s128, %s129
      %p140 = scmp.eq.s32.totalorder %s26, 0
      %p141 = por %p139, %p140
      %p142 = scmp.ne.s32.totalorder %s128, %s129
      %p143 = scmp.eq.s32.totalorder %s27, 1
      %p144 = por %p142, %p143
      %p146 = scmp.ne.s32.totalorder %s129, %s145
      %p147 = scmp.eq.s32.totalorder %s27, 0
      %p148 = por %p146, %p147
      %s149 = ssub.s32 %s21, %s28
      %p150 = scmp.eq.s32.totalorder %s149, 0
      %s152 = sadd.s32 %s151, 1
      %s153 = scalar_select %p150, %s151, %s152
      %p156 = pneg %p150
      %p157 = scmp.eq.s32.totalorder %s21, 1
      %p158 = por %p156, %p157
      %p159 = scmp.ne.s32.totalorder %s151, %s154
      %p160 = scmp.eq.s32.totalorder %s21, 0
      %p161 = por %p159, %p160
      %p162 = scmp.ne.s32.totalorder %s151, %s154
      %p163 = scmp.eq.s32.totalorder %s26, 1
      %p164 = por %p162, %p163
      %p165 = scmp.ne.s32.totalorder %s154, %s155
      %p166 = scmp.eq.s32.totalorder %s26, 0
      %p167 = por %p165, %p166
      %p168 = scmp.ne.s32.totalorder %s154, %s155
      %p169 = scmp.eq.s32.totalorder %s27, 1
      %p170 = por %p168, %p169
      %p172 = scmp.ne.s32.totalorder %s155, %s171
      %p173 = scmp.eq.s32.totalorder %s27, 0
      %p174 = por %p172, %p173
      %p175 = scmp.le.s32.totalorder 1, %s21
      %p176 = scmp.lt.s32.totalorder %s21, 3
      %p177 = pnand %p175, %p176
      %p178 = pneg %p177
      // Predicated region
      $region9: #{tpu_custom_call.1} parent=5 // pred_check
        _
      $region10: #{tpu_custom_call.1} parent=5 // pred_check_branch
        %180 = sbr.rel (%p177) target = $region12
      $region11: #{tpu_custom_call.1} parent=5 // pred_region
        %s181 = ssub.s32 %s21, 1
        // Predicated region
        $region13: #{tpu_custom_call.1} parent=11 // pred_check
          %p182 = pneg %p94
        $region14: #{tpu_custom_call.1} parent=11 // pred_check_branch
          %184 = sbr.rel (%p182) target = $region16
        $region15: #{tpu_custom_call.1} parent=11 // pred_region
          %s186 = ssub.s32 512, 512
          %187 = vsyncadd [#allocation6], %s186
          %s188 = sshll.u32 [#allocation7], 4
          %s189 = int_to_ptr.vmem [resolvable:$true] %s188
          %194 = dma.hbm_to_vmem [thread:$0]  %s2, 512, %s189, [#allocation6], 128, 128, 8
        $region16: #{tpu_custom_call.1} parent=11 // pred_fallthru
          _
        // Predicated region
        $region17: #{tpu_custom_call.1} parent=11 // pred_check
          %p195 = pneg %p115
        $region18: #{tpu_custom_call.1} parent=11 // pred_check_branch
          %197 = sbr.rel (%p195) target = $region20
        $region19: #{tpu_custom_call.1} parent=11 // pred_region
          _
        $region20: #{tpu_custom_call.1} parent=11 // pred_fallthru
          _
      $region12: #{tpu_custom_call.1} parent=5 // pred_fallthru
        _
      %p198 = scmp.lt.s32.totalorder %s21, 2
      // Predicated region
      $region21: #{tpu_custom_call.1} parent=5 // pred_check
        %p199 = pneg %p198
      $region22: #{tpu_custom_call.1} parent=5 // pred_check_branch
        %201 = sbr.rel (%p199) target = $region24
      $region23: #{tpu_custom_call.1} parent=5 // pred_region
        // Predicated region
        $region25: #{tpu_custom_call.1} parent=23 // pred_check
          %p202 = pneg %p41
        $region26: #{tpu_custom_call.1} parent=23 // pred_check_branch
          %204 = sbr.rel (%p202) target = $region28
        $region27: #{tpu_custom_call.1} parent=23 // pred_region
          %s205 = sand.u32 %s31, 1
          %s206 = scalar_lea.sflag [#allocation3], %s205
          %s207 = sand.u32 %s31, 1
          %s208 = smul.addr %s207, 4
          %s209 = scalar_lea.vmem [#allocation2], %s208
          %s211 = ssub.s32 64, 64
          %212 = vsyncadd %s206, %s211
          %s213 = smul.addr %s21, 64
          %s214 = scalar_lea.hbm %s0, %s213
          %s216 = sshll.u32 %s209, 4
          %s217 = int_to_ptr.vmem [resolvable:$true] %s216
          %219 = dma.hbm_to_vmem [thread:$0]  %s214, 64, %s217, %s206
        $region28: #{tpu_custom_call.1} parent=23 // pred_fallthru
          _
        // Predicated region
        $region29: #{tpu_custom_call.1} parent=23 // pred_check
          %p220 = pneg %p67
        $region30: #{tpu_custom_call.1} parent=23 // pred_check_branch
          %222 = sbr.rel (%p220) target = $region32
        $region31: #{tpu_custom_call.1} parent=23 // pred_region
          %s223 = sand.u32 %s21, 1
          %s224 = scalar_lea.sflag [#allocation6], %s223
          %s225 = sand.u32 %s57, 1
          %s226 = smul.addr %s225, 2
          %s227 = scalar_lea.vmem [#allocation5], %s226
          %s229 = ssub.s32 32, 32
          %230 = vsyncadd %s224, %s229
          %s231 = smul.addr %s21, 32
          %s232 = scalar_lea.hbm %s1, %s231
          %s234 = sshll.u32 %s227, 4
          %s235 = int_to_ptr.vmem [resolvable:$true] %s234
          %237 = dma.hbm_to_vmem [thread:$0]  %s232, 32, %s235, %s224
        $region32: #{tpu_custom_call.1} parent=23 // pred_fallthru
          _
      $region24: #{tpu_custom_call.1} parent=5 // pred_fallthru
        _
      %p238 = scmp.le.s32.totalorder 1, %s21
      %p239 = scmp.lt.s32.totalorder %s21, 3
      %p240 = pnand %p238, %p239
      %p241 = pneg %p240
      // Predicated region
      $region33: #{tpu_custom_call.1} parent=5 // pred_check
        _
      $region34: #{tpu_custom_call.1} parent=5 // pred_check_branch
        %243 = sbr.rel (%p240) target = $region36
      $region35: #{tpu_custom_call.1} parent=5 // pred_region
        %s244 = ssub.s32 %s21, 1
        %s245 = sand.u32 %s34, 1
        %s246 = scalar_lea.sflag [#allocation3], %s245
        %s247 = sand.u32 %s34, 1
        %s248 = smul.addr %s247, 4
        %s249 = scalar_lea.vmem [#allocation2], %s248
        // Predicated region
        $region37: #{tpu_custom_call.1} parent=35 // pred_check
          %p250 = pneg %p47
        $region38: #{tpu_custom_call.1} parent=35 // pred_check_branch
          %252 = sbr.rel (%p250) target = $region40
        $region39: #{tpu_custom_call.1} parent=35 // pred_region
          %253 = dma.done %s246, 64
        $region40: #{tpu_custom_call.1} parent=35 // pred_fallthru
          _
        %s254 = sand.u32 %s26, 1
        %s255 = scalar_lea.sflag [#allocation6], %s254
        %s256 = sand.u32 %s60, 1
        %s257 = smul.addr %s256, 2
        %s258 = scalar_lea.vmem [#allocation5], %s257
        // Predicated region
        $region41: #{tpu_custom_call.1} parent=35 // pred_check
          %p259 = pneg %p73
        $region42: #{tpu_custom_call.1} parent=35 // pred_check_branch
          %261 = sbr.rel (%p259) target = $region44
        $region43: #{tpu_custom_call.1} parent=35 // pred_region
          %262 = dma.done %s255, 32
        $region44: #{tpu_custom_call.1} parent=35 // pred_fallthru
          _
        // Predicated region
        $region45: #{tpu_custom_call.1} parent=35 // pred_check
          %p263 = pneg %p94
        $region46: #{tpu_custom_call.1} parent=35 // pred_check_branch
          %265 = sbr.rel (%p263) target = $region48
        $region47: #{tpu_custom_call.1} parent=35 // pred_region
          %266 = dma.done [#allocation6], 512
        $region48: #{tpu_custom_call.1} parent=35 // pred_fallthru
          _
        %s267 = sand.u32 %s34, 1
        %s268 = scalar_lea.sflag [#allocation3], %s267
        %s269 = sand.u32 %s34, 1
        %s270 = smul.addr %s269, 4
        %s271 = scalar_lea.vmem [#allocation2], %s270
        %p272 = pneg %p47
        %p273 = pneg %p44
        %s274 = sand.u32 %s26, 1
        %s275 = scalar_lea.sflag [#allocation6], %s274
        %s276 = sand.u32 %s60, 1
        %s277 = smul.addr %s276, 2
        %s278 = scalar_lea.vmem [#allocation5], %s277
        %p279 = pneg %p73
        %p280 = pneg %p70
        %p281 = pneg %p94
        %p282 = pneg %p91
        %p283 = pneg %p115
        %p284 = pneg %p112
        %p285 = pneg %p141
        %p286 = pneg %p138
        %p287 = scmp.lt.s32.totalorder %s26, 1
        %s288 = scalar_select %p287, %s26, 1
        %s289 = smul.addr %s288, 2
        %s290 = scalar_lea.vmem %s4, %s289
        %p291 = pneg %p167
        %p292 = pneg %p164
        %s293 = sand.u32 %s154, 1
        %s294 = scalar_lea.sflag [#allocation4], %s293
        %s295 = sand.u32 %s154, 1
        %s296 = scalar_lea.vmem [#allocation8], %s295
        %p297 = scmp.lt.s32.totalorder %s26, 1
        %s298 = scalar_select %p297, %s26, 1
        %s299 = smul.addr %s298, 2
        %s300 = scalar_lea.vmem %s4, %s299
        %v302 = vld [vmem:[%s249] sm:$0xf]
        %v303 = vld [vmem:[%s258] sm:$0x3]
        %v304 = vld [vmem:[#allocation7] sm:$0xff]
        %v305 = vld [vmem:[#allocation7 + $0x8] sm:$0xff]
        %v306 = vld [vmem:[#allocation7 + $0x10] sm:$0xff]
        %v307 = vld [vmem:[#allocation7 + $0x18] sm:$0xff]
        %v308 = vld [vmem:[%s3] sm:$0x3]
        %v310 = vlaneseq
        %v311 = vshrl.u32 %v310, 7
        %v312 = vsub.s32 0, %v311
        %v313 = vrot.slane %v308, %v312
        %v314 = vlaneseq
        %v315 = vshrl.u32 %v314, 7
        %v316 = vsub.s32 1, %v315
        %v317 = vrot.slane %v308, %v316
        %v324 = vunpack.c.l.b16 %v304
        %v325 = vunpack.c.h.b16 %v304
        %v326 = vunpack.c.l.b16 %v305
        %v327 = vunpack.c.h.b16 %v305
        %v328 = vunpack.c.l.b16 %v306
        %v329 = vunpack.c.h.b16 %v306
        %v330 = vunpack.c.l.b16 %v307
        %v331 = vunpack.c.h.b16 %v307
        %v332 = vpack.c.b16 %v326, %v324
        %v333 = vpack.c.b16 %v327, %v325
        %v334 = vpack.c.b16 %v330, %v328
        %v335 = vpack.c.b16 %v331, %v329
        %vm340 = vcmask 261120
        %v342 = vsel %vm340, %v302, 0
        %344 = vmatprep.subr.bf16.mxu0 %v333
        %345 = vmatpush1.bf16.msra.mxu0 %v332
        %346 = vmatprep.subr.bf16.mxu0 %v335
        %347 = vmatpush1.bf16.msra.mxu0 %v334
        %348 = vmatprep.subr.bf16.mxu0 0
        %349 = vmatpush1.bf16.msra.mxu0 0
        %350 = vmatprep.subr.bf16.mxu0 0
        %351 = vmatpush1.bf16.msra.mxu0 0
        %352 = vmatprep.subr.bf16.mxu0 0
        %353 = vmatpush1.bf16.msra.mxu0 0
        %354 = vmatprep.subr.bf16.mxu0 0
        %355 = vmatpush1.bf16.msra.mxu0 0
        %356 = vmatprep.subr.bf16.mxu0 0
        %357 = vmatpush1.bf16.msra.mxu0 0
        %358 = vmatprep.subr.bf16.mxu0 0
        %359 = vmatpush1.bf16.msra.mxu0 0
        %360 = vmatprep.subr.bf16.mxu0 0
        %361 = vmatpush1.bf16.msra.mxu0 0
        %362 = vmatprep.subr.bf16.mxu0 0
        %363 = vmatpush1.bf16.msra.mxu0 0
        %364 = vmatprep.subr.bf16.mxu0 0
        %365 = vmatpush1.bf16.msra.mxu0 0
        %366 = vmatprep.subr.bf16.mxu0 0
        %367 = vmatpush1.bf16.msra.mxu0 0
        %368 = vmatprep.subr.bf16.mxu0 0
        %369 = vmatpush1.bf16.msra.mxu0 0
        %370 = vmatprep.subr.bf16.mxu0 0
        %371 = vmatpush1.bf16.msra.mxu0 0
        %372 = vmatprep.subr.bf16.mxu0 0
        %373 = vmatpush1.bf16.msra.mxu0 0
        %374 = vmatprep.subr.bf16.mxu0 0
        %375 = vmatpush1.bf16.msra.mxu0 0
        %376 = vmatprep.mubr.bf16.mxu0 0
        %377 = vmatmul.mubr.bf16.gmra.mrb[0].mxu0 %v342
        %v378 = vpop.f32.mrb[0].mxu0
        %v379 = vadd.f32 %v313, %v378
        %v380 = vpop.f32.mrb[0].mxu0
        %v381 = vadd.f32 %v317, %v380
        %v382 = vpop.f32.mrb[0].mxu0
        %v383 = vpop.f32.mrb[0].mxu0
        %384 = vdwg.mxu0
        %v385 = vpack.c.bf16 %v379, %v379
        %v386 = vpack.c.bf16 %v381, %v381
        %v387 = vlaneseq
        %v388 = vshrl.u32 %v387, 7
        %v389 = vsub.s32 0, %v388
        %v390 = vrot.slane %v303, %v389
        %392 = vrot.lane.b32.xlu0 %v385, 96
        %v393 = vpop.permute.xlu0 %392
        %vm394 = vcmask 64512
        %v396 = vsel %vm394, %v385, 0
        %v399 = vsel %vm394, %v393, 0
        %401 = vmatprep.subr.bf16.mxu0 0
        %402 = vmatpush1.bf16.xpose.msra.mxu0 %v399
        %403 = vmatprep.subr.bf16.mxu0 0
        %404 = vmatpush1.bf16.xpose.msra.mxu0 0
        %405 = vmatprep.subr.bf16.mxu0 0
        %406 = vmatpush1.bf16.xpose.msra.mxu0 0
        %407 = vmatprep.subr.bf16.mxu0 0
        %408 = vmatpush1.bf16.xpose.msra.mxu0 0
        %409 = vmatprep.subr.bf16.mxu0 0
        %410 = vmatpush1.bf16.xpose.msra.mxu0 0
        %411 = vmatprep.subr.bf16.mxu0 0
        %412 = vmatpush1.bf16.xpose.msra.mxu0 0
        %413 = vmatprep.subr.bf16.mxu0 0
        %414 = vmatpush1.bf16.xpose.msra.mxu0 0
        %415 = vmatprep.subr.bf16.mxu0 0
        %416 = vmatpush1.bf16.xpose.msra.mxu0 0
        %417 = vmatprep.subr.bf16.mxu0 0
        %418 = vmatpush1.bf16.xpose.msra.mxu0 0
        %419 = vmatprep.subr.bf16.mxu0 0
        %420 = vmatpush1.bf16.xpose.msra.mxu0 0
        %421 = vmatprep.subr.bf16.mxu0 0
        %422 = vmatpush1.bf16.xpose.msra.mxu0 0
        %423 = vmatprep.subr.bf16.mxu0 0
        %424 = vmatpush1.bf16.xpose.msra.mxu0 0
        %425 = vmatprep.subr.bf16.mxu0 0
        %426 = vmatpush1.bf16.xpose.msra.mxu0 0
        %427 = vmatprep.subr.bf16.mxu0 0
        %428 = vmatpush1.bf16.xpose.msra.mxu0 0
        %429 = vmatprep.subr.bf16.mxu0 0
        %430 = vmatpush1.bf16.xpose.msra.mxu0 0
        %431 = vmatprep.subr.bf16.mxu0 0
        %432 = vmatpush1.bf16.xpose.msra.mxu0 0
        %433 = vmatprep.mubr.bf16.mxu0 0
        %434 = vmatmul.mubr.bf16.gmra.mrb[0].mxu0 %v396
        %v435 = vpop.f32.mrb[0].mxu0
        %v436 = vadd.f32 %v390, %v435
        %v437 = vpop.f32.mrb[0].mxu0
        %v438 = vpop.f32.mrb[0].mxu0
        %v439 = vpop.f32.mrb[0].mxu0
        %440 = vdwg.mxu0
        %v441 = vsel %vm394, %v436, -inf
        %442 = vmax.xlane.f32.xlu0 %v441
        %v443 = vpop.xlane.xlu0 %442
        %v444 = vsub.f32 %v436, %v443
        %v445 = vmul.f32 %v444, 1.442695
        %v446 = vpow.pop %v445
        %v447 = vsel %vm394, %v446, 0.0
        %448 = vadd.xlane.f32.xlu0 %v447
        %v449 = vpop.xlane.xlu0 %448
        %v450 = vrcp.pop %v449
        %v451 = vmul.f32 %v446, %v450
        %v452 = vsel %vm394, %v451, 0.0
        %v453 = vrot.slane %v452, 4
        %v454 = vadd.f32 %v452, %v453
        %v455 = vrot.slane %v454, 2
        %v456 = vadd.f32 %v454, %v455
        %v457 = vrot.slane %v456, 1
        %v458 = vadd.f32 %v456, %v457
        %v459 = vadd.f32 %v458, 0.0
        %v460 = vpack.c.bf16 %v451, %v451
        %461 = vrot.lane.b32.xlu0 %v385, 120
        %v462 = vpop.permute.xlu0 %461
        %463 = vrot.lane.b32.xlu0 %v385, 88
        %v464 = vpop.permute.xlu0 %463
        %v466 = vsel %vm394, %v462, 0
        %v469 = vsel %vm394, %v464, 0
        %471 = vmatprep.subr.bf16.mxu0 0
        %472 = vmatpush1.bf16.xpose.msra.mxu0 %v469
        %473 = vmatprep.subr.bf16.mxu0 0
        %474 = vmatpush1.bf16.xpose.msra.mxu0 0
        %475 = vmatprep.subr.bf16.mxu0 0
        %476 = vmatpush1.bf16.xpose.msra.mxu0 0
        %477 = vmatprep.subr.bf16.mxu0 0
        %478 = vmatpush1.bf16.xpose.msra.mxu0 0
        %479 = vmatprep.subr.bf16.mxu0 0
        %480 = vmatpush1.bf16.xpose.msra.mxu0 0
        %481 = vmatprep.subr.bf16.mxu0 0
        %482 = vmatpush1.bf16.xpose.msra.mxu0 0
        %483 = vmatprep.subr.bf16.mxu0 0
        %484 = vmatpush1.bf16.xpose.msra.mxu0 0
        %485 = vmatprep.subr.bf16.mxu0 0
        %486 = vmatpush1.bf16.xpose.msra.mxu0 0
        %487 = vmatprep.subr.bf16.mxu0 0
        %488 = vmatpush1.bf16.xpose.msra.mxu0 0
        %489 = vmatprep.subr.bf16.mxu0 0
        %490 = vmatpush1.bf16.xpose.msra.mxu0 0
        %491 = vmatprep.subr.bf16.mxu0 0
        %492 = vmatpush1.bf16.xpose.msra.mxu0 0
        %493 = vmatprep.subr.bf16.mxu0 0
        %494 = vmatpush1.bf16.xpose.msra.mxu0 0
        %495 = vmatprep.subr.bf16.mxu0 0
        %496 = vmatpush1.bf16.xpose.msra.mxu0 0
        %497 = vmatprep.subr.bf16.mxu0 0
        %498 = vmatpush1.bf16.xpose.msra.mxu0 0
        %499 = vmatprep.subr.bf16.mxu0 0
        %500 = vmatpush1.bf16.xpose.msra.mxu0 0
        %501 = vmatprep.subr.bf16.mxu0 0
        %502 = vmatpush1.bf16.xpose.msra.mxu0 0
        %503 = vmatprep.mubr.bf16.mxu0 0
        %504 = vmatmul.mubr.bf16.gmra.mrb[0].mxu0 %v466
        %v505 = vpop.f32.mrb[0].mxu0
        %v506 = vadd.f32 %v390, %v505
        %v507 = vpop.f32.mrb[0].mxu0
        %v508 = vpop.f32.mrb[0].mxu0
        %v509 = vpop.f32.mrb[0].mxu0
        %510 = vdwg.mxu0
        %v511 = vsel %vm394, %v506, -inf
        %512 = vmax.xlane.f32.xlu0 %v511
        %v513 = vpop.xlane.xlu0 %512
        %v514 = vsub.f32 %v506, %v513
        %v515 = vmul.f32 %v514, 1.442695
        %v516 = vpow.pop %v515
        %v517 = vsel %vm394, %v516, 0.0
        %518 = vadd.xlane.f32.xlu0 %v517
        %v519 = vpop.xlane.xlu0 %518
        %v520 = vrcp.pop %v519
        %v521 = vmul.f32 %v516, %v520
        %v522 = vsel %vm394, %v521, 0.0
        %v523 = vrot.slane %v522, 4
        %v524 = vadd.f32 %v522, %v523
        %v525 = vrot.slane %v524, 2
        %v526 = vadd.f32 %v524, %v525
        %v527 = vrot.slane %v526, 1
        %v528 = vadd.f32 %v526, %v527
        %v529 = vadd.f32 %v459, %v528
        %v530 = vpack.c.bf16 %v521, %v521
        %531 = vrot.lane.b32.xlu0 %v385, 32
        %v532 = vpop.permute.xlu0 %531
        %v534 = vsel %vm394, %v530, 0
        %vm536 = vcmask 1043456
        %v538 = vsel %vm536, %v532, 0
        %540 = vmatprep.subr.bf16.mxu0 0
        %541 = vmatpush1.bf16.msra.mxu0 %v538
        %542 = vmatprep.subr.bf16.mxu0 0
        %543 = vmatpush1.bf16.msra.mxu0 0
        %544 = vmatprep.subr.bf16.mxu0 0
        %545 = vmatpush1.bf16.msra.mxu0 0
        %546 = vmatprep.subr.bf16.mxu0 0
        %547 = vmatpush1.bf16.msra.mxu0 0
        %548 = vmatprep.subr.bf16.mxu0 0
        %549 = vmatpush1.bf16.msra.mxu0 0
        %550 = vmatprep.subr.bf16.mxu0 0
        %551 = vmatpush1.bf16.msra.mxu0 0
        %552 = vmatprep.subr.bf16.mxu0 0
        %553 = vmatpush1.bf16.msra.mxu0 0
        %554 = vmatprep.subr.bf16.mxu0 0
        %555 = vmatpush1.bf16.msra.mxu0 0
        %556 = vmatprep.subr.bf16.mxu0 0
        %557 = vmatpush1.bf16.msra.mxu0 0
        %558 = vmatprep.subr.bf16.mxu0 0
        %559 = vmatpush1.bf16.msra.mxu0 0
        %560 = vmatprep.subr.bf16.mxu0 0
        %561 = vmatpush1.bf16.msra.mxu0 0
        %562 = vmatprep.subr.bf16.mxu0 0
        %563 = vmatpush1.bf16.msra.mxu0 0
        %564 = vmatprep.subr.bf16.mxu0 0
        %565 = vmatpush1.bf16.msra.mxu0 0
        %566 = vmatprep.subr.bf16.mxu0 0
        %567 = vmatpush1.bf16.msra.mxu0 0
        %568 = vmatprep.subr.bf16.mxu0 0
        %569 = vmatpush1.bf16.msra.mxu0 0
        %570 = vmatprep.subr.bf16.mxu0 0
        %571 = vmatpush1.bf16.msra.mxu0 0
        %572 = vmatprep.mubr.bf16.mxu0 0
        %573 = vmatmul.mubr.bf16.gmra.mrb[0].mxu0 %v534
        %v574 = vpop.f32.mrb[0].mxu0
        %v575 = vadd.f32 0.0, %v574
        %v576 = vpop.f32.mrb[0].mxu0
        %v577 = vpop.f32.mrb[0].mxu0
        %v578 = vpop.f32.mrb[0].mxu0
        %579 = vdwg.mxu0
        %580 = vrot.lane.b32.xlu0 %v385, 64
        %v581 = vpop.permute.xlu0 %580
        %v583 = vsel %vm394, %v460, 0
        %v586 = vsel %vm536, %v581, 0
        %588 = vmatprep.subr.bf16.mxu0 0
        %589 = vmatpush1.bf16.msra.mxu0 %v586
        %590 = vmatprep.subr.bf16.mxu0 0
        %591 = vmatpush1.bf16.msra.mxu0 0
        %592 = vmatprep.subr.bf16.mxu0 0
        %593 = vmatpush1.bf16.msra.mxu0 0
        %594 = vmatprep.subr.bf16.mxu0 0
        %595 = vmatpush1.bf16.msra.mxu0 0
        %596 = vmatprep.subr.bf16.mxu0 0
        %597 = vmatpush1.bf16.msra.mxu0 0
        %598 = vmatprep.subr.bf16.mxu0 0
        %599 = vmatpush1.bf16.msra.mxu0 0
        %600 = vmatprep.subr.bf16.mxu0 0
        %601 = vmatpush1.bf16.msra.mxu0 0
        %602 = vmatprep.subr.bf16.mxu0 0
        %603 = vmatpush1.bf16.msra.mxu0 0
        %604 = vmatprep.subr.bf16.mxu0 0
        %605 = vmatpush1.bf16.msra.mxu0 0
        %606 = vmatprep.subr.bf16.mxu0 0
        %607 = vmatpush1.bf16.msra.mxu0 0
        %608 = vmatprep.subr.bf16.mxu0 0
        %609 = vmatpush1.bf16.msra.mxu0 0
        %610 = vmatprep.subr.bf16.mxu0 0
        %611 = vmatpush1.bf16.msra.mxu0 0
        %612 = vmatprep.subr.bf16.mxu0 0
        %613 = vmatpush1.bf16.msra.mxu0 0
        %614 = vmatprep.subr.bf16.mxu0 0
        %615 = vmatpush1.bf16.msra.mxu0 0
        %616 = vmatprep.subr.bf16.mxu0 0
        %617 = vmatpush1.bf16.msra.mxu0 0
        %618 = vmatprep.subr.bf16.mxu0 0
        %619 = vmatpush1.bf16.msra.mxu0 0
        %620 = vmatprep.mubr.bf16.mxu0 0
        %621 = vmatmul.mubr.bf16.gmra.mrb[0].mxu0 %v583
        %v622 = vpop.f32.mrb[0].mxu0
        %v623 = vadd.f32 %v575, %v622
        %v624 = vpop.f32.mrb[0].mxu0
        %v625 = vpop.f32.mrb[0].mxu0
        %v626 = vpop.f32.mrb[0].mxu0
        %627 = vdwg.mxu0
        %628 = vrot.lane.b32.xlu0 %v385, 112
        %v629 = vpop.permute.xlu0 %628
        %630 = vrot.lane.b32.xlu0 %v385, 80
        %v631 = vpop.permute.xlu0 %630
        %v633 = vsel %vm394, %v629, 0
        %v636 = vsel %vm394, %v631, 0
        %638 = vmatprep.subr.bf16.mxu0 0
        %639 = vmatpush1.bf16.xpose.msra.mxu0 %v636
        %640 = vmatprep.subr.bf16.mxu0 0
        %641 = vmatpush1.bf16.xpose.msra.mxu0 0
        %642 = vmatprep.subr.bf16.mxu0 0
        %643 = vmatpush1.bf16.xpose.msra.mxu0 0
        %644 = vmatprep.subr.bf16.mxu0 0
        %645 = vmatpush1.bf16.xpose.msra.mxu0 0
        %646 = vmatprep.subr.bf16.mxu0 0
        %647 = vmatpush1.bf16.xpose.msra.mxu0 0
        %648 = vmatprep.subr.bf16.mxu0 0
        %649 = vmatpush1.bf16.xpose.msra.mxu0 0
        %650 = vmatprep.subr.bf16.mxu0 0
        %651 = vmatpush1.bf16.xpose.msra.mxu0 0
        %652 = vmatprep.subr.bf16.mxu0 0
        %653 = vmatpush1.bf16.xpose.msra.mxu0 0
        %654 = vmatprep.subr.bf16.mxu0 0
        %655 = vmatpush1.bf16.xpose.msra.mxu0 0
        %656 = vmatprep.subr.bf16.mxu0 0
        %657 = vmatpush1.bf16.xpose.msra.mxu0 0
        %658 = vmatprep.subr.bf16.mxu0 0
        %659 = vmatpush1.bf16.xpose.msra.mxu0 0
        %660 = vmatprep.subr.bf16.mxu0 0
        %661 = vmatpush1.bf16.xpose.msra.mxu0 0
        %662 = vmatprep.subr.bf16.mxu0 0
        %663 = vmatpush1.bf16.xpose.msra.mxu0 0
        %664 = vmatprep.subr.bf16.mxu0 0
        %665 = vmatpush1.bf16.xpose.msra.mxu0 0
        %666 = vmatprep.subr.bf16.mxu0 0
        %667 = vmatpush1.bf16.xpose.msra.mxu0 0
        %668 = vmatprep.subr.bf16.mxu0 0
        %669 = vmatpush1.bf16.xpose.msra.mxu0 0
        %670 = vmatprep.mubr.bf16.mxu0 0
        %671 = vmatmul.mubr.bf16.gmra.mrb[0].mxu0 %v633
        %v672 = vpop.f32.mrb[0].mxu0
        %v673 = vadd.f32 %v390, %v672
        %v674 = vpop.f32.mrb[0].mxu0
        %v675 = vpop.f32.mrb[0].mxu0
        %v676 = vpop.f32.mrb[0].mxu0
        %677 = vdwg.mxu0
        %v678 = vsel %vm394, %v673, -inf
        %679 = vmax.xlane.f32.xlu0 %v678
        %v680 = vpop.xlane.xlu0 %679
        %v681 = vsub.f32 %v673, %v680
        %v682 = vmul.f32 %v681, 1.442695
        %v683 = vpow.pop %v682
        %v684 = vsel %vm394, %v683, 0.0
        %685 = vadd.xlane.f32.xlu0 %v684
        %v686 = vpop.xlane.xlu0 %685
        %v687 = vrcp.pop %v686
        %v688 = vmul.f32 %v683, %v687
        %v689 = vsel %vm394, %v688, 0.0
        %v690 = vrot.slane %v689, 4
        %v691 = vadd.f32 %v689, %v690
        %v692 = vrot.slane %v691, 2
        %v693 = vadd.f32 %v691, %v692
        %v694 = vrot.slane %v693, 1
        %v695 = vadd.f32 %v693, %v694
        %v696 = vadd.f32 %v529, %v695
        %v697 = vpack.c.bf16 %v688, %v688
        %v699 = vsel %vm394, %v697, 0
        %v702 = vsel %vm536, %v386, 0
        %704 = vmatprep.subr.bf16.mxu0 0
        %705 = vmatpush1.bf16.msra.mxu0 %v702
        %706 = vmatprep.subr.bf16.mxu0 0
        %707 = vmatpush1.bf16.msra.mxu0 0
        %708 = vmatprep.subr.bf16.mxu0 0
        %709 = vmatpush1.bf16.msra.mxu0 0
        %710 = vmatprep.subr.bf16.mxu0 0
        %711 = vmatpush1.bf16.msra.mxu0 0
        %712 = vmatprep.subr.bf16.mxu0 0
        %713 = vmatpush1.bf16.msra.mxu0 0
        %714 = vmatprep.subr.bf16.mxu0 0
        %715 = vmatpush1.bf16.msra.mxu0 0
        %716 = vmatprep.subr.bf16.mxu0 0
        %717 = vmatpush1.bf16.msra.mxu0 0
        %718 = vmatprep.subr.bf16.mxu0 0
        %719 = vmatpush1.bf16.msra.mxu0 0
        %720 = vmatprep.subr.bf16.mxu0 0
        %721 = vmatpush1.bf16.msra.mxu0 0
        %722 = vmatprep.subr.bf16.mxu0 0
        %723 = vmatpush1.bf16.msra.mxu0 0
        %724 = vmatprep.subr.bf16.mxu0 0
        %725 = vmatpush1.bf16.msra.mxu0 0
        %726 = vmatprep.subr.bf16.mxu0 0
        %727 = vmatpush1.bf16.msra.mxu0 0
        %728 = vmatprep.subr.bf16.mxu0 0
        %729 = vmatpush1.bf16.msra.mxu0 0
        %730 = vmatprep.subr.bf16.mxu0 0
        %731 = vmatpush1.bf16.msra.mxu0 0
        %732 = vmatprep.subr.bf16.mxu0 0
        %733 = vmatpush1.bf16.msra.mxu0 0
        %734 = vmatprep.subr.bf16.mxu0 0
        %735 = vmatpush1.bf16.msra.mxu0 0
        %736 = vmatprep.mubr.bf16.mxu0 0
        %737 = vmatmul.mubr.bf16.gmra.mrb[0].mxu0 %v699
        %v738 = vpop.f32.mrb[0].mxu0
        %v739 = vadd.f32 0.0, %v738
        %v740 = vpop.f32.mrb[0].mxu0
        %v741 = vpop.f32.mrb[0].mxu0
        %v742 = vpop.f32.mrb[0].mxu0
        %743 = vdwg.mxu0
        %v744 = vadd.f32 %v623, %v739
        %745 = vrot.lane.b32.xlu0 %v385, 104
        %v746 = vpop.permute.xlu0 %745
        %747 = vrot.lane.b32.xlu0 %v385, 72
        %v748 = vpop.permute.xlu0 %747
        %v750 = vsel %vm394, %v746, 0
        %v753 = vsel %vm394, %v748, 0
        %755 = vmatprep.subr.bf16.mxu0 0
        %756 = vmatpush1.bf16.xpose.msra.mxu0 %v753
        %757 = vmatprep.subr.bf16.mxu0 0
        %758 = vmatpush1.bf16.xpose.msra.mxu0 0
        %759 = vmatprep.subr.bf16.mxu0 0
        %760 = vmatpush1.bf16.xpose.msra.mxu0 0
        %761 = vmatprep.subr.bf16.mxu0 0
        %762 = vmatpush1.bf16.xpose.msra.mxu0 0
        %763 = vmatprep.subr.bf16.mxu0 0
        %764 = vmatpush1.bf16.xpose.msra.mxu0 0
        %765 = vmatprep.subr.bf16.mxu0 0
        %766 = vmatpush1.bf16.xpose.msra.mxu0 0
        %767 = vmatprep.subr.bf16.mxu0 0
        %768 = vmatpush1.bf16.xpose.msra.mxu0 0
        %769 = vmatprep.subr.bf16.mxu0 0
        %770 = vmatpush1.bf16.xpose.msra.mxu0 0
        %771 = vmatprep.subr.bf16.mxu0 0
        %772 = vmatpush1.bf16.xpose.msra.mxu0 0
        %773 = vmatprep.subr.bf16.mxu0 0
        %774 = vmatpush1.bf16.xpose.msra.mxu0 0
        %775 = vmatprep.subr.bf16.mxu0 0
        %776 = vmatpush1.bf16.xpose.msra.mxu0 0
        %777 = vmatprep.subr.bf16.mxu0 0
        %778 = vmatpush1.bf16.xpose.msra.mxu0 0
        %779 = vmatprep.subr.bf16.mxu0 0
        %780 = vmatpush1.bf16.xpose.msra.mxu0 0
        %781 = vmatprep.subr.bf16.mxu0 0
        %782 = vmatpush1.bf16.xpose.msra.mxu0 0
        %783 = vmatprep.subr.bf16.mxu0 0
        %784 = vmatpush1.bf16.xpose.msra.mxu0 0
        %785 = vmatprep.subr.bf16.mxu0 0
        %786 = vmatpush1.bf16.xpose.msra.mxu0 0
        %787 = vmatprep.mubr.bf16.mxu0 0
        %788 = vmatmul.mubr.bf16.gmra.mrb[0].mxu0 %v750
        %v789 = vpop.f32.mrb[0].mxu0
        %v790 = vadd.f32 %v390, %v789
        %v791 = vpop.f32.mrb[0].mxu0
        %v792 = vpop.f32.mrb[0].mxu0
        %v793 = vpop.f32.mrb[0].mxu0
        %794 = vdwg.mxu0
        %v795 = vsel %vm394, %v790, -inf
        %796 = vmax.xlane.f32.xlu0 %v795
        %v797 = vpop.xlane.xlu0 %796
        %v798 = vsub.f32 %v790, %v797
        %v799 = vmul.f32 %v798, 1.442695
        %v800 = vpow.pop %v799
        %v801 = vsel %vm394, %v800, 0.0
        %802 = vadd.xlane.f32.xlu0 %v801
        %v803 = vpop.xlane.xlu0 %802
        %v804 = vrcp.pop %v803
        %v805 = vmul.f32 %v800, %v804
        %v806 = vsel %vm394, %v805, 0.0
        %v807 = vrot.slane %v806, 4
        %v808 = vadd.f32 %v806, %v807
        %v809 = vrot.slane %v808, 2
        %v810 = vadd.f32 %v808, %v809
        %v811 = vrot.slane %v810, 1
        %v812 = vadd.f32 %v810, %v811
        %v813 = vadd.f32 %v696, %v812
        %v814 = vpack.c.bf16 %v805, %v805
        %816 = vrot.lane.b32.xlu0 %v386, 96
        %v817 = vpop.permute.xlu0 %816
        %v819 = vsel %vm394, %v814, 0
        %v822 = vsel %vm536, %v817, 0
        %824 = vmatprep.subr.bf16.mxu0 0
        %825 = vmatpush1.bf16.msra.mxu0 %v822
        %826 = vmatprep.subr.bf16.mxu0 0
        %827 = vmatpush1.bf16.msra.mxu0 0
        %828 = vmatprep.subr.bf16.mxu0 0
        %829 = vmatpush1.bf16.msra.mxu0 0
        %830 = vmatprep.subr.bf16.mxu0 0
        %831 = vmatpush1.bf16.msra.mxu0 0
        %832 = vmatprep.subr.bf16.mxu0 0
        %833 = vmatpush1.bf16.msra.mxu0 0
        %834 = vmatprep.subr.bf16.mxu0 0
        %835 = vmatpush1.bf16.msra.mxu0 0
        %836 = vmatprep.subr.bf16.mxu0 0
        %837 = vmatpush1.bf16.msra.mxu0 0
        %838 = vmatprep.subr.bf16.mxu0 0
        %839 = vmatpush1.bf16.msra.mxu0 0
        %840 = vmatprep.subr.bf16.mxu0 0
        %841 = vmatpush1.bf16.msra.mxu0 0
        %842 = vmatprep.subr.bf16.mxu0 0
        %843 = vmatpush1.bf16.msra.mxu0 0
        %844 = vmatprep.subr.bf16.mxu0 0
        %845 = vmatpush1.bf16.msra.mxu0 0
        %846 = vmatprep.subr.bf16.mxu0 0
        %847 = vmatpush1.bf16.msra.mxu0 0
        %848 = vmatprep.subr.bf16.mxu0 0
        %849 = vmatpush1.bf16.msra.mxu0 0
        %850 = vmatprep.subr.bf16.mxu0 0
        %851 = vmatpush1.bf16.msra.mxu0 0
        %852 = vmatprep.subr.bf16.mxu0 0
        %853 = vmatpush1.bf16.msra.mxu0 0
        %854 = vmatprep.subr.bf16.mxu0 0
        %855 = vmatpush1.bf16.msra.mxu0 0
        %856 = vmatprep.mubr.bf16.mxu0 0
        %857 = vmatmul.mubr.bf16.gmra.mrb[0].mxu0 %v819
        %v858 = vpop.f32.mrb[0].mxu0
        %v859 = vadd.f32 0.0, %v858
        %v860 = vpop.f32.mrb[0].mxu0
        %v861 = vpop.f32.mrb[0].mxu0
        %v862 = vpop.f32.mrb[0].mxu0
        %863 = vdwg.mxu0
        %v864 = vadd.f32 %v744, %v859
        %v865 = vcombine.high %v864, 0.0
        %v867 = vunpack.c.l.s4 1983009808
        %v868 = vunpack.c.0.s8 %v867
        %v869 = vlaneseq
        %v870 = vshrl.u32 %v869, 7
        %v871 = vsub.s32 %v868, %v870
        %v872 = vrot.slane %v864, %v871
        %v874 = vunpack.c.l.s4 1983009808
        %v875 = vunpack.c.0.s8 %v874
        %v876 = vlaneseq
        %v877 = vshrl.u32 %v876, 7
        %v878 = vsub.s32 %v875, %v877
        %v879 = vrot.slane %v865, %v878
        %v880 = vcombine.high %v872, 0.0
        %v882 = vunpack.c.l.s4 1934713408
        %v883 = vunpack.c.0.s8 %v882
        %v884 = vlaneseq
        %v885 = vshrl.u32 %v884, 7
        %v886 = vsub.s32 %v883, %v885
        %v887 = vrot.slane %v872, %v886
        %v889 = vunpack.c.l.s4 1934713408
        %v890 = vunpack.c.0.s8 %v889
        %v891 = vlaneseq
        %v892 = vshrl.u32 %v891, 7
        %v893 = vsub.s32 %v890, %v892
        %v894 = vrot.slane %v880, %v893
        %v895 = vcombine.high %v879, 0.0
        %v897 = vunpack.c.l.s4 1934713408
        %v898 = vunpack.c.0.s8 %v897
        %v899 = vlaneseq
        %v900 = vshrl.u32 %v899, 7
        %v901 = vsub.s32 %v898, %v900
        %v902 = vrot.slane %v879, %v901
        %v904 = vunpack.c.l.s4 1934713408
        %v905 = vunpack.c.0.s8 %v904
        %v906 = vlaneseq
        %v907 = vshrl.u32 %v906, 7
        %v908 = vsub.s32 %v905, %v907
        %v909 = vrot.slane %v895, %v908
        %v910 = vcombine.high %v887, 0.0
        %v911 = vcombine.high %v894, 0.0
        %v912 = vcombine.high %v902, 0.0
        %v913 = vcombine.high %v909, 0.0
        %915 = vrot.lane.b32.xlu0 %v910, 32
        %v916 = vpop.permute.xlu0 %915
        %919 = vrot.lane.b32.xlu0 %v894, 64
        %v920 = vpop.permute.xlu0 %919
        %923 = vrot.lane.b32.xlu0 %v911, 96
        %v924 = vpop.permute.xlu0 %923
        %927 = vrot.lane.b32.xlu0 %v912, 32
        %v928 = vpop.permute.xlu0 %927
        %931 = vrot.lane.b32.xlu0 %v909, 64
        %v932 = vpop.permute.xlu0 %931
        %935 = vrot.lane.b32.xlu0 %v913, 96
        %v936 = vpop.permute.xlu0 %935
        %v938 = vsel %vm340, %v887, %v916
        %vm939 = vcmask 523264
        %v940 = vsel %vm939, %v938, %v920
        %vm941 = vcmask 785408
        %v942 = vsel %vm941, %v940, %v924
        %v943 = vsel %vm340, %v902, %v928
        %v944 = vsel %vm939, %v943, %v932
        %v945 = vsel %vm941, %v944, %v936
        %v946 = vpack.c.bf16 %v942, %v942
        %v947 = vpack.c.bf16 %v945, %v945
        %v950 = vcombine.low %v946, %v947
        %v952 = vunpack.c.l.s4 1966171168
        %v953 = vunpack.c.0.s8 %v952
        %v954 = vlaneseq
        %v955 = vshrl.u32 %v954, 7
        %v956 = vsub.s32 %v953, %v955
        %v957 = vrot.slane %v950, %v956
        %v959 = vunpack.c.l.s4 1966171168
        %v960 = vunpack.c.0.s8 %v959
        %v961 = vlaneseq
        %v962 = vshrl.u32 %v961, 7
        %v963 = vsub.s32 %v960, %v962
        %v964 = vrot.slane %v957, %v963
        %vm966 = vcmask 1040384
        %vm967 = vsmask.f32 256
        %vm968 = vmand %vm966, %vm967
        %vm969 = vcmask 1041409
        %vm970 = vsmask.f32 1280
        %vm971 = vmand %vm969, %vm970
        %vm972 = vmor %vm971, %vm968
        %v973 = vld [vmem:[%s300] sm:$0x3]
        %v974 = vsel %vm972, %v964, %v973
        %975 = vst [vmem:[%s300] sm:$0x3] %v974
        %v976 = vmul.f32 %v813, 0.25
        %v977 = vadd.f32 %v976, %v303
        %vm978 = vcmask 58369
        %v979 = vsel %vm978, %v977, -inf
        %980 = vmax.xlane.f32.xlu0 %v979
        %v981 = vpop.xlane.xlu0 %980
        %v982 = vsub.f32 %v977, %v981
        %v983 = vmul.f32 %v982, 1.442695
        %v984 = vpow.pop %v983
        %v985 = vsel %vm978, %v984, 0.0
        %986 = vadd.xlane.f32.xlu0 %v985
        %v987 = vpop.xlane.xlu0 %986
        %v988 = vrcp.pop %v987
        %v989 = vmul.f32 %v984, %v988
        %990 = vst.msk [vmem:[%s296 - $0x1] sm:$0x2] %vm978, %v989
        %p991 = scmp.lt.s32.totalorder %s26, 1
        %s992 = scalar_select %p991, %s26, 1
        %s993 = smul.addr %s992, 2
        %s994 = scalar_lea.vmem %s4, %s993
        %s995 = sand.u32 %s154, 1
        %s996 = scalar_lea.sflag [#allocation4], %s995
        %s997 = sand.u32 %s154, 1
        %s998 = scalar_lea.vmem [#allocation8], %s997
        // Predicated region
        $region49: #{tpu_custom_call.1} parent=35 // pred_check
          %p999 = pneg %p138
        $region50: #{tpu_custom_call.1} parent=35 // pred_check_branch
          %1001 = sbr.rel (%p999) target = $region52
        $region51: #{tpu_custom_call.1} parent=35 // pred_region
          _
        $region52: #{tpu_custom_call.1} parent=35 // pred_fallthru
          _
        // Predicated region
        $region53: #{tpu_custom_call.1} parent=35 // pred_check
          %p1002 = pneg %p164
        $region54: #{tpu_custom_call.1} parent=35 // pred_check_branch
          %1004 = sbr.rel (%p1002) target = $region56
        $region55: #{tpu_custom_call.1} parent=35 // pred_region
          %s1006 = ssub.s32 16, 16
          %1007 = vsyncadd %s996, %s1006
          %s1008 = smul.addr %s26, 16
          %s1009 = scalar_lea.hbm %s5, %s1008
          %s1011 = sshll.u32 %s998, 4
          %s1012 = int_to_ptr.vmem [resolvable:$true] %s1011
          %1014 = dma.vmem_to_hbm [thread:$0]  %s1012, 16, %s1009, %s996
        $region56: #{tpu_custom_call.1} parent=35 // pred_fallthru
          _
      $region36: #{tpu_custom_call.1} parent=5 // pred_fallthru
        _
      %p1015 = scmp.le.s32.totalorder 2, %s21
      // Predicated region
      $region57: #{tpu_custom_call.1} parent=5 // pred_check
        %p1016 = pneg %p1015
      $region58: #{tpu_custom_call.1} parent=5 // pred_check_branch
        %1018 = sbr.rel (%p1016) target = $region60
      $region59: #{tpu_custom_call.1} parent=5 // pred_region
        %s1019 = ssub.s32 %s21, 2
        // Predicated region
        $region61: #{tpu_custom_call.1} parent=59 // pred_check
          %p1020 = pneg %p144
        $region62: #{tpu_custom_call.1} parent=59 // pred_check_branch
          %1022 = sbr.rel (%p1020) target = $region64
        $region63: #{tpu_custom_call.1} parent=59 // pred_region
          %p1023 = scmp.lt.s32.totalorder %s27, 1
          %s1024 = scalar_select %p1023, %s27, 1
          %s1025 = smul.addr %s1024, 2
          %s1026 = scalar_lea.vmem %s4, %s1025
        $region64: #{tpu_custom_call.1} parent=59 // pred_fallthru
          _
        // Predicated region
        $region65: #{tpu_custom_call.1} parent=59 // pred_check
          %p1027 = pneg %p170
        $region66: #{tpu_custom_call.1} parent=59 // pred_check_branch
          %1029 = sbr.rel (%p1027) target = $region68
        $region67: #{tpu_custom_call.1} parent=59 // pred_region
          %s1030 = sand.u32 %s155, 1
          %s1031 = scalar_lea.sflag [#allocation4], %s1030
          %s1032 = sand.u32 %s155, 1
          %s1033 = scalar_lea.vmem [#allocation8], %s1032
          %1034 = dma.done %s1031, 16
        $region68: #{tpu_custom_call.1} parent=59 // pred_fallthru
          _
      $region60: #{tpu_custom_call.1} parent=5 // pred_fallthru
        _
    $region6: #{tpu_custom_call.1} parent=1 // loop_footer
      %s25 = sadd.s32 1, %s21
    $region7: #{tpu_custom_call.1} parent=1 // loop_footer_branch
      %20 = sbr.rel target = $region3
    $region8: #{tpu_custom_call.1} parent=1 // loop_exit
      _
    %1035 = vsyncpa [#allocation3], 1
    %s1036 = scalar_lea.sflag [#allocation3], 1
    %1037 = vsyncpa %s1036, 1
    %1038 = vsyncpa [#allocation6], 1
    %s1039 = scalar_lea.sflag [#allocation6], 1
    %1040 = vsyncpa %s1039, 1
    %1041 = vsyncpa [#allocation4], 1
    %s1042 = scalar_lea.sflag [#allocation4], 1
    %1043 = vsyncpa %s1042, 1

</llo_original>
